<compile_context>
chip_gen: v7x
topology: tpu7x:2x2x1
jax: 0.10.0
libtpu: 0.0.40
codegen_flags: <defaults>
</compile_context>

<pallas_src>
import jax
import jax.numpy as jnp
from jax import lax
from jax.experimental import pallas as pl
from jax.experimental.pallas import tpu as pltpu


# ---------------------------------------------------------------------------
# Host-side parameter preparation
# ---------------------------------------------------------------------------
def fold_bn_into_conv(w, conv_bias, gamma, beta, running_mean, running_var, eps=1e-5):
    """Fold eval-mode BN scale into the conv weights (f32) and return the bias.

    w: (3, 3, Cin, Cout) HWIO f32.  Returns (w_scaled f32, bias f32 (Cout,)).
    """
    scale = gamma / jnp.sqrt(running_var + eps)          # (Cout,)
    w_scaled = w * scale[None, None, None, :]            # fold in f32 (cast later, once)
    bias = scale * (conv_bias - running_mean) + beta     # (Cout,)
    return w_scaled, bias


def build_banded_weights(w_scaled, img_w):
    """(3,3,Cin,Cout) f32 -> (3, (img_w+2)*Cin, img_w*Cout) bf16 banded matrices.

    For each ky, row (x+kx)*Cin+ci / col x*Cout+co carries w[ky,kx,ci,co]; the kx
    shift therefore lives entirely in the (static) weight band — no im2col, concat or
    lane roll is needed at runtime on the lane-dense (rows, W*C) activation slab.
    """
    KH, KW, Cin, Cout = w_scaled.shape
    bands = []
    for ky in range(KH):
        b = jnp.zeros(((img_w + KW - 1) * Cin, img_w * Cout), jnp.float32)
        for kx in range(KW):
            # shift[p, x] = 1  iff  p == x + kx   (padded-pixel p feeds output pixel x)
            shift = jnp.eye(img_w + KW - 1, img_w, k=-kx, dtype=jnp.float32)
            b = b + jnp.kron(shift, w_scaled[ky, kx])
        bands.append(b)
    return jnp.stack(bands).astype(jnp.bfloat16)          # cast to bf16 once, after fold


# ---------------------------------------------------------------------------
# Fused Pallas kernel (both conv+BN+ReLU layers, one image per grid step)
# ---------------------------------------------------------------------------
def conv_block_pallas(x_lane, wb1, b1, wb2, b2, *, H, W, Cin, Cmid, Cout):
    """x_lane: (N, H, W*Cin) bf16 lane-dense input.
    wb1: (3, (W+2)*Cin,  W*Cmid) bf16   b1: (1, W*Cmid) f32
    wb2: (3, (W+2)*Cmid, W*Cout) bf16   b2: (1, W*Cout) f32
    Returns (N, H, W*Cout) bf16.
    """
    N = x_lane.shape[0]

    def kernel(x_ref, wb1_ref, b1_ref, wb2_ref, b2_ref, o_ref, xpad_ref, midpad_ref):
        def zero_halo(pad_ref, c):
            # Zero ONLY the 1-px border strips; the interior is fully overwritten.
            wp = pad_ref.shape[1]                                   # (W+2)*c lanes
            zrow = jnp.zeros((1, wp), pad_ref.dtype)
            pad_ref[0:1, :] = zrow                                  # top halo row
            pad_ref[H + 1:H + 2, :] = zrow                          # bottom halo row
            zcol = jnp.zeros((H + 2, c), pad_ref.dtype)
            pad_ref[:, 0:c] = zcol                                  # left halo pixel
            pad_ref[:, wp - c:wp] = zcol                            # right halo pixel

        def conv_bn_relu(pad_ref, wb_ref, bias_ref):
            # 3 accumulating matmuls (one per ky row-slice), f32 accumulation.
            # kx taps are already inside the banded weights -> K=(W+2)*C, Nout=W*Cout.
            acc = jnp.dot(pad_ref[0:H, :], wb_ref[0],
                          preferred_element_type=jnp.float32)
            for ky in (1, 2):
                acc = acc + jnp.dot(pad_ref[ky:ky + H, :], wb_ref[ky],
                                    preferred_element_type=jnp.float32)
            # BN scale already folded into the weights; epilogue = bias + ReLU only.
            return jnp.maximum(acc + bias_ref[...], 0.0)

        zero_halo(xpad_ref, Cin)
        zero_halo(midpad_ref, Cmid)

        # ---- layer 1: conv -> (folded BN) bias -> ReLU ----
        xpad_ref[1:H + 1, Cin:(W + 1) * Cin] = x_ref[0]             # interior, lane-dense
        y1 = conv_bn_relu(xpad_ref, wb1_ref, b1_ref)                # (H, W*Cmid) f32

        # ---- layer 2: intermediate stays in VMEM (re-padded), no HBM round trip ----
        midpad_ref[1:H + 1, Cmid:(W + 1) * Cmid] = y1.astype(jnp.bfloat16)
        y2 = conv_bn_relu(midpad_ref, wb2_ref, b2_ref)              # (H, W*Cout) f32

        # Lane-dense output slab (W*Cout = 128 at demo shape), bf16 writeback.
        o_ref[0] = y2.astype(o_ref.dtype)

    return pl.pallas_call(
        kernel,
        out_shape=jax.ShapeDtypeStruct((N, H, W * Cout), jnp.bfloat16),
        grid_spec=pltpu.PrefetchScalarGridSpec(
            num_scalar_prefetch=0,
            grid=(N,),
            in_specs=[
                pl.BlockSpec((1, H, W * Cin), lambda n: (n, 0, 0)),
                pl.BlockSpec(wb1.shape, lambda n: (0, 0, 0)),
                pl.BlockSpec(b1.shape, lambda n: (0, 0)),
                pl.BlockSpec(wb2.shape, lambda n: (0, 0, 0)),
                pl.BlockSpec(b2.shape, lambda n: (0, 0)),
            ],
            out_specs=pl.BlockSpec((1, H, W * Cout), lambda n: (n, 0, 0)),
            scratch_shapes=[
                pltpu.VMEM((H + 2, (W + 2) * Cin), jnp.bfloat16),    # padded layer-1 in
                pltpu.VMEM((H + 2, (W + 2) * Cmid), jnp.bfloat16),   # padded layer-1 out
            ],
        ),
        compiler_params=pltpu.CompilerParams(
            dimension_semantics=("parallel",)),
    )(x_lane, wb1, b1, wb2, b2)


# ---------------------------------------------------------------------------
# Full module wrapper (PyTorch NCHW in / NCHW out)
# ---------------------------------------------------------------------------
def conv_block(x_nchw, p1, p2):
    """ConvBlock forward. x_nchw: (N, Cin, H, W)."""
    N, Cin, H, W = x_nchw.shape
    w1, cb1, g1, be1, m1, v1 = p1
    w2, cb2, g2, be2, m2, v2 = p2
    Cmid = w1.shape[3]
    Cout = w2.shape[3]

    # Fold BN scale into weights (f32), build banded weights, cast bf16 once.
    w1s, bias1 = fold_bn_into_conv(w1, cb1, g1, be1, m1, v1)
    w2s, bias2 = fold_bn_into_conv(w2, cb2, g2, be2, m2, v2)
    wb1 = build_banded_weights(w1s, W)                       # (3, (W+2)*Cin,  W*Cmid)
    wb2 = build_banded_weights(w2s, W)                       # (3, (W+2)*Cmid, W*Cout)
    b1_lane = jnp.tile(bias1, W)[None, :].astype(jnp.float32)   # (1, W*Cmid)
    b2_lane = jnp.tile(bias2, W)[None, :].astype(jnp.float32)   # (1, W*Cout)

    # NCHW -> lane-dense (N, H, W*Cin) bf16 feed (channel fastest within a pixel).
    x_lane = jnp.transpose(x_nchw, (0, 2, 3, 1)).reshape(N, H, W * Cin)
    x_lane = x_lane.astype(jnp.bfloat16)

    y = conv_block_pallas(x_lane, wb1, b1_lane, wb2, b2_lane,
                          H=H, W=W, Cin=Cin, Cmid=Cmid, Cout=Cout)
    y = y.reshape(N, H, W, Cout).astype(jnp.float32)
    return jnp.transpose(y, (0, 3, 1, 2))                    # -> NCHW


# ---------------------------------------------------------------------------
# Pure-JAX reference + synthetic parameters
# ---------------------------------------------------------------------------
def conv_block_reference(x_nchw, p1, p2):
    def layer(x, params):
        w, b, g, be, m, v = params
        y = lax.conv_general_dilated(
            x, w, window_strides=(1, 1), padding=((1, 1), (1, 1)),
            dimension_numbers=("NHWC", "HWIO", "NHWC"))
        y = y + b[None, None, None, :]
        y = g * (y - m) / jnp.sqrt(v + 1e-5) + be
        return jnp.maximum(y, 0.0)

    x = jnp.transpose(x_nchw, (0, 2, 3, 1))
    x = layer(x, p1)
    x = layer(x, p2)
    return jnp.transpose(x, (0, 3, 1, 2))


def make_params(key, inc, outc):
    """Deterministic synthetic parameters for one Conv2d+BatchNorm2d layer."""
    kw, kb = jax.random.split(key)
    fan_in = inc * 9
    bound = 1.0 / jnp.sqrt(fan_in)
    w = jax.random.uniform(kw, (3, 3, inc, outc), jnp.float32, -bound, bound)
    conv_bias = jax.random.uniform(kb, (outc,), jnp.float32, -bound, bound)
    idx = jnp.arange(outc, dtype=jnp.float32)
    gamma = 1.0 + 0.1 * idx
    beta = 0.05 * idx
    running_mean = 0.01 * idx
    running_var = 1.0 + 0.02 * idx
    return w, conv_bias, gamma, beta, running_mean, running_var


if __name__ == "__main__":
    key = jax.random.PRNGKey(0)
    kx, k1, k2 = jax.random.split(key, 3)

    N, inc, outc, H, W = 2, 4, 8, 16, 16
    x = jax.random.normal(kx, (N, inc, H, W), jnp.float32)

    p1 = make_params(k1, inc, outc)
    p2 = make_params(k2, outc, outc)

    out = jax.block_until_ready(conv_block(x, p1, p2))
    ref = jax.block_until_ready(conv_block_reference(x, p1, p2))

    assert out.shape == (N, outc, H, W)
    # bf16 matmul operands, bf16 intermediate and bf16 output writeback -> loose tol.
    assert jnp.allclose(out, ref, rtol=3e-2, atol=3e-2), "mismatch vs reference"

    print("KERNEL_OK")
</pallas_src>

<mosaic_0001>
module attributes {stable_mosaic.version = 11 : i64} {
  func.func @kernel(%arg0: i32, %arg1: memref<1x16x64xbf16, #tpu.memory_space<vmem>>, %arg2: memref<3x72x128xbf16, #tpu.memory_space<vmem>>, %arg3: memref<1x128xf32, #tpu.memory_space<vmem>>, %arg4: memref<3x144x128xbf16, #tpu.memory_space<vmem>>, %arg5: memref<1x128xf32, #tpu.memory_space<vmem>>, %arg6: memref<1x16x128xbf16, #tpu.memory_space<vmem>>, %arg7: memref<18x72xbf16, #tpu.memory_space<vmem>>, %arg8: memref<18x144xbf16, #tpu.memory_space<vmem>>) attributes {dimension_semantics = [#tpu.dimension_semantics<parallel>], iteration_bounds = array<i64: 2>, scalar_prefetch = 0 : i64, scratch_operands = 2 : i64, tpu.core_type = #tpu.core_type<tc>, window_params = [{transform_indices = @transform_0, window_bounds = array<i64: 1, 16, 64>}, {pipeline_mode = #tpu.pipeline_mode<synchronous>, transform_indices = @transform_1, window_bounds = array<i64: 3, 72, 128>}, {pipeline_mode = #tpu.pipeline_mode<synchronous>, transform_indices = @transform_2, window_bounds = array<i64: 1, 128>}, {pipeline_mode = #tpu.pipeline_mode<synchronous>, transform_indices = @transform_3, window_bounds = array<i64: 3, 144, 128>}, {pipeline_mode = #tpu.pipeline_mode<synchronous>, transform_indices = @transform_4, window_bounds = array<i64: 1, 128>}, {transform_indices = @transform_5, window_bounds = array<i64: 1, 16, 128>}]} {
    %cst = arith.constant 0.000000e+00 : bf16
    %0 = vector.broadcast %cst : bf16 to vector<1x72xbf16>
    %c0 = arith.constant 0 : index
    %c0_0 = arith.constant 0 : index
    %1 = vector.load %arg7[%c0, %c0_0] : memref<18x72xbf16, #tpu.memory_space<vmem>>, vector<1x72xbf16>
    tpu.vector_store %arg7[%c0, %c0_0], %0 {strides = array<i32>} : memref<18x72xbf16, #tpu.memory_space<vmem>>, vector<1x72xbf16>,
    %c17 = arith.constant 17 : index
    %c0_1 = arith.constant 0 : index
    %2 = vector.load %arg7[%c17, %c0_1] : memref<18x72xbf16, #tpu.memory_space<vmem>>, vector<1x72xbf16>
    tpu.vector_store %arg7[%c17, %c0_1], %0 {strides = array<i32>} : memref<18x72xbf16, #tpu.memory_space<vmem>>, vector<1x72xbf16>,
    %cst_2 = arith.constant 0.000000e+00 : bf16
    %3 = vector.broadcast %cst_2 : bf16 to vector<18x4xbf16>
    %c0_3 = arith.constant 0 : index
    %c0_4 = arith.constant 0 : index
    %4 = vector.load %arg7[%c0_3, %c0_4] : memref<18x72xbf16, #tpu.memory_space<vmem>>, vector<18x4xbf16>
    tpu.vector_store %arg7[%c0_3, %c0_4], %3 {strides = array<i32>} : memref<18x72xbf16, #tpu.memory_space<vmem>>, vector<18x4xbf16>,
    %c0_5 = arith.constant 0 : index
    %c68 = arith.constant 68 : index
    %5 = vector.load %arg7[%c0_5, %c68] : memref<18x72xbf16, #tpu.memory_space<vmem>>, vector<18x4xbf16>
    tpu.vector_store %arg7[%c0_5, %c68], %3 {strides = array<i32>} : memref<18x72xbf16, #tpu.memory_space<vmem>>, vector<18x4xbf16>,
    %cst_6 = arith.constant 0.000000e+00 : bf16
    %6 = vector.broadcast %cst_6 : bf16 to vector<1x144xbf16>
    %c0_7 = arith.constant 0 : index
    %c0_8 = arith.constant 0 : index
    %7 = vector.load %arg8[%c0_7, %c0_8] : memref<18x144xbf16, #tpu.memory_space<vmem>>, vector<1x144xbf16>
    tpu.vector_store %arg8[%c0_7, %c0_8], %6 {strides = array<i32>} : memref<18x144xbf16, #tpu.memory_space<vmem>>, vector<1x144xbf16>,
    %c17_9 = arith.constant 17 : index
    %c0_10 = arith.constant 0 : index
    %8 = vector.load %arg8[%c17_9, %c0_10] : memref<18x144xbf16, #tpu.memory_space<vmem>>, vector<1x144xbf16>
    tpu.vector_store %arg8[%c17_9, %c0_10], %6 {strides = array<i32>} : memref<18x144xbf16, #tpu.memory_space<vmem>>, vector<1x144xbf16>,
    %cst_11 = arith.constant 0.000000e+00 : bf16
    %9 = vector.broadcast %cst_11 : bf16 to vector<18x8xbf16>
    %c0_12 = arith.constant 0 : index
    %c0_13 = arith.constant 0 : index
    %10 = vector.load %arg8[%c0_12, %c0_13] : memref<18x144xbf16, #tpu.memory_space<vmem>>, vector<18x8xbf16>
    tpu.vector_store %arg8[%c0_12, %c0_13], %9 {strides = array<i32>} : memref<18x144xbf16, #tpu.memory_space<vmem>>, vector<18x8xbf16>,
    %c0_14 = arith.constant 0 : index
    %c136 = arith.constant 136 : index
    %11 = vector.load %arg8[%c0_14, %c136] : memref<18x144xbf16, #tpu.memory_space<vmem>>, vector<18x8xbf16>
    tpu.vector_store %arg8[%c0_14, %c136], %9 {strides = array<i32>} : memref<18x144xbf16, #tpu.memory_space<vmem>>, vector<18x8xbf16>,
    %c0_15 = arith.constant 0 : index
    %c0_16 = arith.constant 0 : index
    %c0_17 = arith.constant 0 : index
    %12 = vector.load %arg1[%c0_15, %c0_16, %c0_17] : memref<1x16x64xbf16, #tpu.memory_space<vmem>>, vector<1x16x64xbf16>
    %13 = vector.shape_cast %12 : vector<1x16x64xbf16> to vector<16x64xbf16>
    %c1 = arith.constant 1 : index
    %c4 = arith.constant 4 : index
    %14 = vector.load %arg7[%c1, %c4] : memref<18x72xbf16, #tpu.memory_space<vmem>>, vector<16x64xbf16>
    tpu.vector_store %arg7[%c1, %c4], %13 {strides = array<i32>} : memref<18x72xbf16, #tpu.memory_space<vmem>>, vector<16x64xbf16>,
    %c0_18 = arith.constant 0 : index
    %c0_19 = arith.constant 0 : index
    %15 = vector.load %arg7[%c0_18, %c0_19] : memref<18x72xbf16, #tpu.memory_space<vmem>>, vector<16x72xbf16>
    %c0_20 = arith.constant 0 : index
    %c0_21 = arith.constant 0 : index
    %c0_22 = arith.constant 0 : index
    %16 = vector.load %arg2[%c0_20, %c0_21, %c0_22] : memref<3x72x128xbf16, #tpu.memory_space<vmem>>, vector<1x72x128xbf16>
    %17 = vector.shape_cast %16 : vector<1x72x128xbf16> to vector<72x128xbf16>
    %cst_23 = arith.constant dense<0.000000e+00> : vector<16x128xf32>
    %18 = tpu.matmul %15, %17, %cst_23 {dimension_numbers = #tpu.dot_dimension_numbers<[1], [0], [0], [1], [0, 0, 1, 1], [], []>} : vector<16x72xbf16>, vector<72x128xbf16>, vector<16x128xf32> -> vector<16x128xf32>
    %c1_24 = arith.constant 1 : index
    %c0_25 = arith.constant 0 : index
    %19 = vector.load %arg7[%c1_24, %c0_25] : memref<18x72xbf16, #tpu.memory_space<vmem>>, vector<16x72xbf16>
    %c1_26 = arith.constant 1 : index
    %c0_27 = arith.constant 0 : index
    %c0_28 = arith.constant 0 : index
    %20 = vector.load %arg2[%c1_26, %c0_27, %c0_28] : memref<3x72x128xbf16, #tpu.memory_space<vmem>>, vector<1x72x128xbf16>
    %21 = vector.shape_cast %20 : vector<1x72x128xbf16> to vector<72x128xbf16>
    %cst_29 = arith.constant dense<0.000000e+00> : vector<16x128xf32>
    %22 = tpu.matmul %19, %21, %cst_29 {dimension_numbers = #tpu.dot_dimension_numbers<[1], [0], [0], [1], [0, 0, 1, 1], [], []>} : vector<16x72xbf16>, vector<72x128xbf16>, vector<16x128xf32> -> vector<16x128xf32>
    %23 = arith.addf %18, %22 : vector<16x128xf32>
    %c2 = arith.constant 2 : index
    %c0_30 = arith.constant 0 : index
    %24 = vector.load %arg7[%c2, %c0_30] : memref<18x72xbf16, #tpu.memory_space<vmem>>, vector<16x72xbf16>
    %c2_31 = arith.constant 2 : index
    %c0_32 = arith.constant 0 : index
    %c0_33 = arith.constant 0 : index
    %25 = vector.load %arg2[%c2_31, %c0_32, %c0_33] : memref<3x72x128xbf16, #tpu.memory_space<vmem>>, vector<1x72x128xbf16>
    %26 = vector.shape_cast %25 : vector<1x72x128xbf16> to vector<72x128xbf16>
    %cst_34 = arith.constant dense<0.000000e+00> : vector<16x128xf32>
    %27 = tpu.matmul %24, %26, %cst_34 {dimension_numbers = #tpu.dot_dimension_numbers<[1], [0], [0], [1], [0, 0, 1, 1], [], []>} : vector<16x72xbf16>, vector<72x128xbf16>, vector<16x128xf32> -> vector<16x128xf32>
    %28 = arith.addf %23, %27 : vector<16x128xf32>
    %c0_35 = arith.constant 0 : index
    %c0_36 = arith.constant 0 : index
    %29 = vector.load %arg3[%c0_35, %c0_36] : memref<1x128xf32, #tpu.memory_space<vmem>>, vector<1x128xf32>
    %30 = vector.broadcast %29 : vector<1x128xf32> to vector<16x128xf32>
    %31 = arith.addf %28, %30 : vector<16x128xf32>
    %cst_37 = arith.constant 0.000000e+00 : f32
    %32 = vector.broadcast %cst_37 : f32 to vector<16x128xf32>
    %33 = arith.maximumf %31, %32 : vector<16x128xf32>
    %34 = arith.truncf %33 : vector<16x128xf32> to vector<16x128xbf16>
    %c1_38 = arith.constant 1 : index
    %c8 = arith.constant 8 : index
    %35 = vector.load %arg8[%c1_38, %c8] : memref<18x144xbf16, #tpu.memory_space<vmem>>, vector<16x128xbf16>
    tpu.vector_store %arg8[%c1_38, %c8], %34 {strides = array<i32>} : memref<18x144xbf16, #tpu.memory_space<vmem>>, vector<16x128xbf16>,
    %c0_39 = arith.constant 0 : index
    %c0_40 = arith.constant 0 : index
    %36 = vector.load %arg8[%c0_39, %c0_40] : memref<18x144xbf16, #tpu.memory_space<vmem>>, vector<16x144xbf16>
    %c0_41 = arith.constant 0 : index
    %c0_42 = arith.constant 0 : index
    %c0_43 = arith.constant 0 : index
    %37 = vector.load %arg4[%c0_41, %c0_42, %c0_43] : memref<3x144x128xbf16, #tpu.memory_space<vmem>>, vector<1x144x128xbf16>
    %38 = vector.shape_cast %37 : vector<1x144x128xbf16> to vector<144x128xbf16>
    %cst_44 = arith.constant dense<0.000000e+00> : vector<16x128xf32>
    %39 = tpu.matmul %36, %38, %cst_44 {dimension_numbers = #tpu.dot_dimension_numbers<[1], [0], [0], [1], [0, 0, 1, 1], [], []>} : vector<16x144xbf16>, vector<144x128xbf16>, vector<16x128xf32> -> vector<16x128xf32>
    %c1_45 = arith.constant 1 : index
    %c0_46 = arith.constant 0 : index
    %40 = vector.load %arg8[%c1_45, %c0_46] : memref<18x144xbf16, #tpu.memory_space<vmem>>, vector<16x144xbf16>
    %c1_47 = arith.constant 1 : index
    %c0_48 = arith.constant 0 : index
    %c0_49 = arith.constant 0 : index
    %41 = vector.load %arg4[%c1_47, %c0_48, %c0_49] : memref<3x144x128xbf16, #tpu.memory_space<vmem>>, vector<1x144x128xbf16>
    %42 = vector.shape_cast %41 : vector<1x144x128xbf16> to vector<144x128xbf16>
    %cst_50 = arith.constant dense<0.000000e+00> : vector<16x128xf32>
    %43 = tpu.matmul %40, %42, %cst_50 {dimension_numbers = #tpu.dot_dimension_numbers<[1], [0], [0], [1], [0, 0, 1, 1], [], []>} : vector<16x144xbf16>, vector<144x128xbf16>, vector<16x128xf32> -> vector<16x128xf32>
    %44 = arith.addf %39, %43 : vector<16x128xf32>
    %c2_51 = arith.constant 2 : index
    %c0_52 = arith.constant 0 : index
    %45 = vector.load %arg8[%c2_51, %c0_52] : memref<18x144xbf16, #tpu.memory_space<vmem>>, vector<16x144xbf16>
    %c2_53 = arith.constant 2 : index
    %c0_54 = arith.constant 0 : index
    %c0_55 = arith.constant 0 : index
    %46 = vector.load %arg4[%c2_53, %c0_54, %c0_55] : memref<3x144x128xbf16, #tpu.memory_space<vmem>>, vector<1x144x128xbf16>
    %47 = vector.shape_cast %46 : vector<1x144x128xbf16> to vector<144x128xbf16>
    %cst_56 = arith.constant dense<0.000000e+00> : vector<16x128xf32>
    %48 = tpu.matmul %45, %47, %cst_56 {dimension_numbers = #tpu.dot_dimension_numbers<[1], [0], [0], [1], [0, 0, 1, 1], [], []>} : vector<16x144xbf16>, vector<144x128xbf16>, vector<16x128xf32> -> vector<16x128xf32>
    %49 = arith.addf %44, %48 : vector<16x128xf32>
    %c0_57 = arith.constant 0 : index
    %c0_58 = arith.constant 0 : index
    %50 = vector.load %arg5[%c0_57, %c0_58] : memref<1x128xf32, #tpu.memory_space<vmem>>, vector<1x128xf32>
    %51 = vector.broadcast %50 : vector<1x128xf32> to vector<16x128xf32>
    %52 = arith.addf %49, %51 : vector<16x128xf32>
    %cst_59 = arith.constant 0.000000e+00 : f32
    %53 = vector.broadcast %cst_59 : f32 to vector<16x128xf32>
    %54 = arith.maximumf %52, %53 : vector<16x128xf32>
    %55 = arith.truncf %54 : vector<16x128xf32> to vector<16x128xbf16>
    %c0_60 = arith.constant 0 : index
    %c0_61 = arith.constant 0 : index
    %c0_62 = arith.constant 0 : index
    %56 = vector.load %arg6[%c0_60, %c0_61, %c0_62] : memref<1x16x128xbf16, #tpu.memory_space<vmem>>, vector<1x16x128xbf16>
    %57 = vector.shape_cast %56 : vector<1x16x128xbf16> to vector<16x128xbf16>
    %58 = vector.shape_cast %55 : vector<16x128xbf16> to vector<1x16x128xbf16>
    tpu.vector_store %arg6[%c0_60, %c0_61, %c0_62], %58 {strides = array<i32>} : memref<1x16x128xbf16, #tpu.memory_space<vmem>>, vector<1x16x128xbf16>,
    return
  }
  func.func @transform_0(%arg0: i32) -> (i32, i32, i32) {
    %c0_i32 = arith.constant 0 : i32
    %c0_i32_0 = arith.constant 0 : i32
    %c0_i32_1 = arith.constant 0 : i32
    return %arg0, %c0_i32, %c0_i32_0 : i32, i32, i32
  }
  func.func @transform_1(%arg0: i32) -> (i32, i32, i32) {
    %c0_i32 = arith.constant 0 : i32
    %c0_i32_0 = arith.constant 0 : i32
    %c0_i32_1 = arith.constant 0 : i32
    %c0_i32_2 = arith.constant 0 : i32
    return %c0_i32, %c0_i32_0, %c0_i32_1 : i32, i32, i32
  }
  func.func @transform_2(%arg0: i32) -> (i32, i32) {
    %c0_i32 = arith.constant 0 : i32
    %c0_i32_0 = arith.constant 0 : i32
    %c0_i32_1 = arith.constant 0 : i32
    return %c0_i32, %c0_i32_0 : i32, i32
  }
  func.func @transform_3(%arg0: i32) -> (i32, i32, i32) {
    %c0_i32 = arith.constant 0 : i32
    %c0_i32_0 = arith.constant 0 : i32
    %c0_i32_1 = arith.constant 0 : i32
    %c0_i32_2 = arith.constant 0 : i32
    return %c0_i32, %c0_i32_0, %c0_i32_1 : i32, i32, i32
  }
  func.func @transform_4(%arg0: i32) -> (i32, i32) {
    %c0_i32 = arith.constant 0 : i32
    %c0_i32_0 = arith.constant 0 : i32
    %c0_i32_1 = arith.constant 0 : i32
    return %c0_i32, %c0_i32_0 : i32, i32
  }
  func.func @transform_5(%arg0: i32) -> (i32, i32, i32) {
    %c0_i32 = arith.constant 0 : i32
    %c0_i32_0 = arith.constant 0 : i32
    %c0_i32_1 = arith.constant 0 : i32
    return %arg0, %c0_i32, %c0_i32_0 : i32, i32, i32
  }
}

</mosaic_0001>

<llo_original>
// kernel: tpu_custom_call.1
$region0: #{tpu_custom_call.1}
  #allocation0 [shape = 'u32[]', space=smem, size = 0x4, offset = 0x4, fixed_abs, tag = 'smem constant byte address 0x4 - core index']
  #allocation1 [shape = 'u32[144,128]{1,0:T(1,128)}', space=vmem, size = 0x12000, scoped, tag = 'internal scratch']
  #allocation2 [shape = 'bf16[18,72]{1,0:T(8,128)(2,1)}', space=vmem, size = 0x1800, scoped, tag = 'scratch operand']
  #allocation3 [shape = 'bf16[18,144]{1,0:T(8,128)(2,1)}', space=vmem, size = 0x3000, scoped, tag = 'scratch operand']
  %s0 = inlined_call_operand.hbm [shape: bf16[2,16,64], index: 0, kind: input, shape index: {}]
  %s1 = inlined_call_operand.hbm [shape: bf16[3,72,128], index: 1, kind: input, shape index: {}]
  %s2 = inlined_call_operand.vmem [shape: f32[1,128], index: 2, kind: input, shape index: {}]
  %s3 = inlined_call_operand.hbm [shape: bf16[3,144,128], index: 3, kind: input, shape index: {}]
  %s4 = inlined_call_operand.vmem [shape: f32[1,128], index: 4, kind: input, shape index: {}]
  %s5 = inlined_call_operand.hbm [shape: bf16[2,16,128], index: 5, kind: output, shape index: {}]
  %s6 = sld [smem:[#allocation0]]
  $region65: #{tpu_custom_call.1} parent=0
    _
  %s8 = ssub.s32 1, %s6
  %s9 = scalar_select 0, %s8, %s6
  $region1: #{tpu_custom_call.1} parent=0
    #allocation4 [shape = 'u8[8192]{0}', space=vmem, size = 0x2000, scoped, tag = 'input window, operand 0']
    #allocation5 [shape = 's32[2]{0}', space=sflag, size = 0x8, scoped, tag = 'scoped memory for tpu_custom_call.1']
    #allocation6 [shape = 's32[2]{0}', space=sflag, size = 0x8, scoped, tag = 'scoped memory for tpu_custom_call.1']
    #allocation7 [shape = 'u8[55296]{0}', space=vmem, size = 0xd800, scoped, tag = 'input window, operand 1, single buffered']
    #allocation8 [shape = 's32[1]{0}', space=sflag, size = 0x4, scoped, tag = 'scoped memory for tpu_custom_call.1']
    #allocation9 [shape = 'u8[110592]{0}', space=vmem, size = 0x1b000, scoped, tag = 'input window, operand 3, single buffered']
    #allocation10 [shape = 'u8[8192]{0}', space=vmem, size = 0x2000, scoped, tag = 'output window, operand 0']
    %10 = vsyncpa [#allocation5], 0
    %s11 = scalar_lea.sflag [#allocation5], 1
    %12 = vsyncpa %s11, 0
    %13 = vsyncpa [#allocation8], 0
    %14 = vsyncpa [#allocation6], 0
    %s15 = scalar_lea.sflag [#allocation6], 1
    %16 = vsyncpa %s15, 0
    loop: start=0, step=1, limit=4
    $region2: #{tpu_custom_call.1} parent=1 // loop_pre_header
      _
    $region3: #{tpu_custom_call.1} parent=1 // loop_header
      %s18 = sphi 0, %s22
      %p19 = scmp.ge.s32.totalorder %s18, 4
      %s28 = sphi 0, %s30
      %s31 = sphi 0, %s28
      %s32 = sphi 0, %s31
      %s48 = sphi 0, %s32
      %s52 = sphi 0, %s52
      %s54 = sphi 0, %s52
      %s55 = sphi 0, %s54
      %s69 = sphi 0, %s55
      %s73 = sphi 0, %s73
      %s75 = sphi 0, %s73
      %s76 = sphi 0, %s75
      %s90 = sphi 0, %s76
      %s94 = sphi 0, %s94
      %s96 = sphi 0, %s94
      %s97 = sphi 0, %s96
      %s111 = sphi 0, %s97
      %s115 = sphi 0, %s115
      %s117 = sphi 0, %s115
      %s118 = sphi 0, %s117
      %s132 = sphi 0, %s118
      %s138 = sphi 0, %s140
      %s141 = sphi 0, %s138
      %s142 = sphi 0, %s141
      %s158 = sphi 0, %s142
    $region4: #{tpu_custom_call.1} parent=1 // loop_header_branch
      %21 = sbr.rel (%p19) target = $region8
    $region5: #{tpu_custom_call.1} parent=1 // loop_body
      %s23 = ssub.s32 %s18, 1
      %s24 = ssub.s32 %s18, 2
      %s25 = sadd.s32 %s18, 1
      %s26 = ssub.s32 %s18, %s25
      %p27 = scmp.eq.s32.totalorder %s26, 0
      %s29 = sadd.s32 %s28, 1
      %s30 = scalar_select %p27, %s28, %s29
      %p33 = pneg %p27
      %p34 = scmp.eq.s32.totalorder %s18, 1
      %p35 = por %p33, %p34
      %p36 = scmp.ne.s32.totalorder %s28, %s31
      %p37 = scmp.eq.s32.totalorder %s18, 0
      %p38 = por %p36, %p37
      %p39 = scmp.ne.s32.totalorder %s28, %s31
      %p40 = scmp.eq.s32.totalorder %s23, 1
      %p41 = por %p39, %p40
      %p42 = scmp.ne.s32.totalorder %s31, %s32
      %p43 = scmp.eq.s32.totalorder %s23, 0
      %p44 = por %p42, %p43
      %p45 = scmp.ne.s32.totalorder %s31, %s32
      %p46 = scmp.eq.s32.totalorder %s24, 1
      %p47 = por %p45, %p46
      %p49 = scmp.ne.s32.totalorder %s32, %s48
      %p50 = scmp.eq.s32.totalorder %s24, 0
      %p51 = por %p49, %p50
      %s53 = sadd.s32 %s52, 1
      %p56 = scmp.eq.s32.totalorder %s18, 1
      %p57 = scmp.ne.s32.totalorder %s52, %s54
      %p58 = scmp.eq.s32.totalorder %s18, 0
      %p59 = por %p57, %p58
      %p60 = scmp.ne.s32.totalorder %s52, %s54
      %p61 = scmp.eq.s32.totalorder %s23, 1
      %p62 = por %p60, %p61
      %p63 = scmp.ne.s32.totalorder %s54, %s55
      %p64 = scmp.eq.s32.totalorder %s23, 0
      %p65 = por %p63, %p64
      %p66 = scmp.ne.s32.totalorder %s54, %s55
      %p67 = scmp.eq.s32.totalorder %s24, 1
      %p68 = por %p66, %p67
      %p70 = scmp.ne.s32.totalorder %s55, %s69
      %p71 = scmp.eq.s32.totalorder %s24, 0
      %p72 = por %p70, %p71
      %s74 = sadd.s32 %s73, 1
      %p77 = scmp.eq.s32.totalorder %s18, 1
      %p78 = scmp.ne.s32.totalorder %s73, %s75
      %p79 = scmp.eq.s32.totalorder %s18, 0
      %p80 = por %p78, %p79
      %p81 = scmp.ne.s32.totalorder %s73, %s75
      %p82 = scmp.eq.s32.totalorder %s23, 1
      %p83 = por %p81, %p82
      %p84 = scmp.ne.s32.totalorder %s75, %s76
      %p85 = scmp.eq.s32.totalorder %s23, 0
      %p86 = por %p84, %p85
      %p87 = scmp.ne.s32.totalorder %s75, %s76
      %p88 = scmp.eq.s32.totalorder %s24, 1
      %p89 = por %p87, %p88
      %p91 = scmp.ne.s32.totalorder %s76, %s90
      %p92 = scmp.eq.s32.totalorder %s24, 0
      %p93 = por %p91, %p92
      %s95 = sadd.s32 %s94, 1
      %p98 = scmp.eq.s32.totalorder %s18, 1
      %p99 = scmp.ne.s32.totalorder %s94, %s96
      %p100 = scmp.eq.s32.totalorder %s18, 0
      %p101 = por %p99, %p100
      %p102 = scmp.ne.s32.totalorder %s94, %s96
      %p103 = scmp.eq.s32.totalorder %s23, 1
      %p104 = por %p102, %p103
      %p105 = scmp.ne.s32.totalorder %s96, %s97
      %p106 = scmp.eq.s32.totalorder %s23, 0
      %p107 = por %p105, %p106
      %p108 = scmp.ne.s32.totalorder %s96, %s97
      %p109 = scmp.eq.s32.totalorder %s24, 1
      %p110 = por %p108, %p109
      %p112 = scmp.ne.s32.totalorder %s97, %s111
      %p113 = scmp.eq.s32.totalorder %s24, 0
      %p114 = por %p112, %p113
      %s116 = sadd.s32 %s115, 1
      %p119 = scmp.eq.s32.totalorder %s18, 1
      %p120 = scmp.ne.s32.totalorder %s115, %s117
      %p121 = scmp.eq.s32.totalorder %s18, 0
      %p122 = por %p120, %p121
      %p123 = scmp.ne.s32.totalorder %s115, %s117
      %p124 = scmp.eq.s32.totalorder %s23, 1
      %p125 = por %p123, %p124
      %p126 = scmp.ne.s32.totalorder %s117, %s118
      %p127 = scmp.eq.s32.totalorder %s23, 0
      %p128 = por %p126, %p127
      %p129 = scmp.ne.s32.totalorder %s117, %s118
      %p130 = scmp.eq.s32.totalorder %s24, 1
      %p131 = por %p129, %p130
      %p133 = scmp.ne.s32.totalorder %s118, %s132
      %p134 = scmp.eq.s32.totalorder %s24, 0
      %p135 = por %p133, %p134
      %s136 = ssub.s32 %s18, %s25
      %p137 = scmp.eq.s32.totalorder %s136, 0
      %s139 = sadd.s32 %s138, 1
      %s140 = scalar_select %p137, %s138, %s139
      %p143 = pneg %p137
      %p144 = scmp.eq.s32.totalorder %s18, 1
      %p145 = por %p143, %p144
      %p146 = scmp.ne.s32.totalorder %s138, %s141
      %p147 = scmp.eq.s32.totalorder %s18, 0
      %p148 = por %p146, %p147
      %p149 = scmp.ne.s32.totalorder %s138, %s141
      %p150 = scmp.eq.s32.totalorder %s23, 1
      %p151 = por %p149, %p150
      %p152 = scmp.ne.s32.totalorder %s141, %s142
      %p153 = scmp.eq.s32.totalorder %s23, 0
      %p154 = por %p152, %p153
      %p155 = scmp.ne.s32.totalorder %s141, %s142
      %p156 = scmp.eq.s32.totalorder %s24, 1
      %p157 = por %p155, %p156
      %p159 = scmp.ne.s32.totalorder %s142, %s158
      %p160 = scmp.eq.s32.totalorder %s24, 0
      %p161 = por %p159, %p160
      %p162 = scmp.le.s32.totalorder 1, %s18
      %p163 = scmp.lt.s32.totalorder %s18, 3
      %p164 = pnand %p162, %p163
      %p165 = pneg %p164
      // Predicated region
      $region9: #{tpu_custom_call.1} parent=5 // pred_check
        _
      $region10: #{tpu_custom_call.1} parent=5 // pred_check_branch
        %167 = sbr.rel (%p164) target = $region12
      $region11: #{tpu_custom_call.1} parent=5 // pred_region
        %s168 = ssub.s32 %s18, 1
        // Predicated region
        $region13: #{tpu_custom_call.1} parent=11 // pred_check
          %p169 = pneg %p65
        $region14: #{tpu_custom_call.1} parent=11 // pred_check_branch
          %171 = sbr.rel (%p169) target = $region16
        $region15: #{tpu_custom_call.1} parent=11 // pred_region
          %s173 = ssub.s32 1728, 1728
          %174 = vsyncadd [#allocation8], %s173
          %s175 = sshll.u32 [#allocation7], 4
          %s176 = int_to_ptr.vmem [resolvable:$true] %s175
          %181 = dma.hbm_to_vmem [thread:$0]  %s1, 1728, %s176, [#allocation8], 64, 64, 4
        $region16: #{tpu_custom_call.1} parent=11 // pred_fallthru
          _
        // Predicated region
        $region17: #{tpu_custom_call.1} parent=11 // pred_check
          %p182 = pneg %p86
        $region18: #{tpu_custom_call.1} parent=11 // pred_check_branch
          %184 = sbr.rel (%p182) target = $region20
        $region19: #{tpu_custom_call.1} parent=11 // pred_region
          _
        $region20: #{tpu_custom_call.1} parent=11 // pred_fallthru
          _
        // Predicated region
        $region21: #{tpu_custom_call.1} parent=11 // pred_check
          %p185 = pneg %p107
        $region22: #{tpu_custom_call.1} parent=11 // pred_check_branch
          %187 = sbr.rel (%p185) target = $region24
        $region23: #{tpu_custom_call.1} parent=11 // pred_region
          %s189 = ssub.s32 3456, 3456
          %190 = vsyncadd [#allocation8], %s189
          %s191 = sshll.u32 [#allocation9], 4
          %s192 = int_to_ptr.vmem [resolvable:$true] %s191
          %197 = dma.hbm_to_vmem [thread:$0]  %s3, 3456, %s192, [#allocation8], 64, 64, 4
        $region24: #{tpu_custom_call.1} parent=11 // pred_fallthru
          _
        // Predicated region
        $region25: #{tpu_custom_call.1} parent=11 // pred_check
          %p198 = pneg %p128
        $region26: #{tpu_custom_call.1} parent=11 // pred_check_branch
          %200 = sbr.rel (%p198) target = $region28
        $region27: #{tpu_custom_call.1} parent=11 // pred_region
          _
        $region28: #{tpu_custom_call.1} parent=11 // pred_fallthru
          _
      $region12: #{tpu_custom_call.1} parent=5 // pred_fallthru
        _
      %p201 = scmp.lt.s32.totalorder %s18, 2
      // Predicated region
      $region29: #{tpu_custom_call.1} parent=5 // pred_check
        %p202 = pneg %p201
      $region30: #{tpu_custom_call.1} parent=5 // pred_check_branch
        %204 = sbr.rel (%p202) target = $region32
      $region31: #{tpu_custom_call.1} parent=5 // pred_region
        // Predicated region
        $region33: #{tpu_custom_call.1} parent=31 // pred_check
          %p205 = pneg %p38
        $region34: #{tpu_custom_call.1} parent=31 // pred_check_branch
          %207 = sbr.rel (%p205) target = $region36
        $region35: #{tpu_custom_call.1} parent=31 // pred_region
          %s208 = sand.u32 %s28, 1
          %s209 = scalar_lea.sflag [#allocation5], %s208
          %s210 = sand.u32 %s28, 1
          %s211 = smul.addr %s210, 8
          %s212 = scalar_lea.vmem [#allocation4], %s211
          %s214 = ssub.s32 128, 128
          %215 = vsyncadd %s209, %s214
          %s216 = smul.addr %s18, 2
          %s217 = smul.addr %s216, 64
          %s218 = scalar_lea.hbm %s0, %s217
          %s219 = sshll.u32 %s212, 4
          %s220 = int_to_ptr.vmem [resolvable:$true] %s219
          %225 = dma.hbm_to_vmem [thread:$0]  %s218, 128, %s220, %s209, 64, 64, 4
        $region36: #{tpu_custom_call.1} parent=31 // pred_fallthru
          _
      $region32: #{tpu_custom_call.1} parent=5 // pred_fallthru
        _
      %p226 = scmp.le.s32.totalorder 1, %s18
      %p227 = scmp.lt.s32.totalorder %s18, 3
      %p228 = pnand %p226, %p227
      %p229 = pneg %p228
      // Predicated region
      $region37: #{tpu_custom_call.1} parent=5 // pred_check
        _
      $region38: #{tpu_custom_call.1} parent=5 // pred_check_branch
        %231 = sbr.rel (%p228) target = $region40
      $region39: #{tpu_custom_call.1} parent=5 // pred_region
        %s232 = ssub.s32 %s18, 1
        %s233 = sand.u32 %s31, 1
        %s234 = scalar_lea.sflag [#allocation5], %s233
        %s235 = sand.u32 %s31, 1
        %s236 = smul.addr %s235, 8
        %s237 = scalar_lea.vmem [#allocation4], %s236
        // Predicated region
        $region41: #{tpu_custom_call.1} parent=39 // pred_check
          %p238 = pneg %p44
        $region42: #{tpu_custom_call.1} parent=39 // pred_check_branch
          %240 = sbr.rel (%p238) target = $region44
        $region43: #{tpu_custom_call.1} parent=39 // pred_region
          %241 = dma.done %s234, 128
        $region44: #{tpu_custom_call.1} parent=39 // pred_fallthru
          _
        // Predicated region
        $region45: #{tpu_custom_call.1} parent=39 // pred_check
          %p242 = pneg %p65
        $region46: #{tpu_custom_call.1} parent=39 // pred_check_branch
          %244 = sbr.rel (%p242) target = $region48
        $region47: #{tpu_custom_call.1} parent=39 // pred_region
          %245 = dma.done [#allocation8], 1728
        $region48: #{tpu_custom_call.1} parent=39 // pred_fallthru
          _
        // Predicated region
        $region49: #{tpu_custom_call.1} parent=39 // pred_check
          %p246 = pneg %p107
        $region50: #{tpu_custom_call.1} parent=39 // pred_check_branch
          %248 = sbr.rel (%p246) target = $region52
        $region51: #{tpu_custom_call.1} parent=39 // pred_region
          %249 = dma.done [#allocation8], 3456
        $region52: #{tpu_custom_call.1} parent=39 // pred_fallthru
          _
        %s250 = sand.u32 %s31, 1
        %s251 = scalar_lea.sflag [#allocation5], %s250
        %s252 = sand.u32 %s31, 1
        %s253 = smul.addr %s252, 8
        %s254 = scalar_lea.vmem [#allocation4], %s253
        %p255 = pneg %p44
        %p256 = pneg %p41
        %p257 = pneg %p65
        %p258 = pneg %p62
        %p259 = pneg %p86
        %p260 = pneg %p83
        %p261 = pneg %p107
        %p262 = pneg %p104
        %p263 = pneg %p128
        %p264 = pneg %p125
        %p265 = pneg %p154
        %p266 = pneg %p151
        %s267 = sand.u32 %s141, 1
        %s268 = scalar_lea.sflag [#allocation6], %s267
        %s269 = sand.u32 %s141, 1
        %s270 = smul.addr %s269, 8
        %s271 = scalar_lea.vmem [#allocation10], %s270
        %vm273 = vcmask 581632
        %vm274 = vsmask.f32 256
        %vm275 = vmand %vm273, %vm274
        %v276 = vld [vmem:[#allocation2] sm:$0x1]
        %v277 = vsel %vm275, 0, %v276
        %278 = vst [vmem:[#allocation2] sm:$0x1] %v277
        %vm279 = vsmask.f32 7938
        %vm280 = vmand %vm273, %vm279
        %v281 = vld [vmem:[#allocation2 + $0x8] sm:$0x1]
        %v282 = vsel %vm280, 0, %v281
        %283 = vst [vmem:[#allocation2 + $0x8] sm:$0x1] %v282
        %vm284 = vcmask 27648
        %285 = vst.msk [vmem:[#allocation2] sm:$0xf] %vm284, 0
        %286 = vst.msk [vmem:[#allocation2 + $0x4] sm:$0xf] %vm284, 0
        %vm287 = vcmask 24576
        %288 = vst.msk [vmem:[#allocation2 + $0x8] sm:$0x1] %vm287, 0
        %vm289 = vcmask 585248
        %290 = vst.msk [vmem:[#allocation2] sm:$0xf] %vm289, 0
        %291 = vst.msk [vmem:[#allocation2 + $0x4] sm:$0xf] %vm289, 0
        %vm292 = vcmask 582176
        %293 = vst.msk [vmem:[#allocation2 + $0x8] sm:$0x1] %vm292, 0
        %vm294 = vcmask 1040384
        %vm295 = vmand %vm294, %vm274
        %vm296 = vcmask 126980
        %vm297 = vsmask.f32 4352
        %vm298 = vmand %vm296, %vm297
        %vm299 = vmor %vm298, %vm295
        %v300 = vld [vmem:[#allocation3] sm:$0x11]
        %v301 = vsel %vm299, 0, %v300
        %302 = vst [vmem:[#allocation3] sm:$0x11] %v301
        %vm303 = vmand %vm294, %vm279
        %vm304 = vsmask.f32 7954
        %vm305 = vmand %vm296, %vm304
        %vm306 = vmor %vm305, %vm303
        %v307 = vld [vmem:[#allocation3 + $0x10] sm:$0x11]
        %v308 = vsel %vm306, 0, %v307
        %309 = vst [vmem:[#allocation3 + $0x10] sm:$0x11] %v308
        %vm310 = vcmask 60416
        %311 = vst.msk [vmem:[#allocation3] sm:$0xf] %vm310, 0
        %312 = vst.msk [vmem:[#allocation3 + $0x8] sm:$0xf] %vm310, 0
        %vm313 = vcmask 57344
        %314 = vst.msk [vmem:[#allocation3 + $0x10] sm:$0x1] %vm313, 0
        %vm315 = vcmask 126016
        %316 = vst.msk [vmem:[#allocation3 + $0x4] sm:$0xf] %vm315, 0
        %317 = vst.msk [vmem:[#allocation3 + $0xc] sm:$0xf] %vm315, 0
        %vm318 = vcmask 122944
        %319 = vst.msk [vmem:[#allocation3 + $0x14] sm:$0x1] %vm318, 0
        %v320 = vld [vmem:[%s237] sm:$0xf]
        %v321 = vld [vmem:[%s237 + $0x4] sm:$0xf]
        %vm322 = vsmask.f32 4368
        %vm323 = vmor %vm274, %vm322
        %v325 = vshrl.u32 %v320, 16
        %v327 = vrot.slane %v325, 7
        %v328 = vshll.u32 %v320, 16
        %v330 = vor.u32 %v327, %v328
        %v331 = vrot.slane %v327, 4
        %v333 = vshrl.u32 %v321, 16
        %v335 = vrot.slane %v333, 7
        %v336 = vshll.u32 %v321, 16
        %v338 = vor.u32 %v335, %v336
        %v339 = vsel %vm323, %v331, %v338
        %v340 = vrot.slane %v335, 4
        %341 = vrot.lane.b32.xlu0 %v330, 4
        %v342 = vpop.permute.xlu0 %341
        %343 = vrot.lane.b32.xlu0 %v339, 4
        %v344 = vpop.permute.xlu0 %343
        %345 = vrot.lane.b32.xlu0 %v340, 4
        %v346 = vpop.permute.xlu0 %345
        %vm350 = vcmask 551968
        %vm351 = vmand %vm350, %vm279
        %v352 = vld [vmem:[#allocation2] sm:$0xf]
        %v353 = vsel %vm351, %v342, %v352
        %354 = vst [vmem:[#allocation2] sm:$0xf] %v353
        %vm355 = vcmask 551968
        %356 = vst.msk [vmem:[#allocation2 + $0x4] sm:$0xf] %vm355, %v344
        %vm357 = vcmask 548896
        %vm358 = vmand %vm357, %vm274
        %v359 = vld [vmem:[#allocation2 + $0x8] sm:$0x1]
        %v360 = vsel %vm358, %v346, %v359
        %361 = vst [vmem:[#allocation2 + $0x8] sm:$0x1] %v360
        %v362 = vld [vmem:[#allocation2] sm:$0xf]
        %v363 = vld [vmem:[#allocation2 + $0x4] sm:$0xf]
        %v364 = vld [vmem:[#allocation7] sm:$0xf]
        %v365 = vld [vmem:[#allocation7 + $0x4] sm:$0xf]
        %v366 = vld [vmem:[#allocation7 + $0x8] sm:$0xf]
        %v367 = vld [vmem:[#allocation7 + $0xc] sm:$0xf]
        %v368 = vld [vmem:[#allocation7 + $0x10] sm:$0xf]
        %v369 = vld [vmem:[#allocation7 + $0x14] sm:$0xf]
        %v370 = vld [vmem:[#allocation7 + $0x18] sm:$0xf]
        %v371 = vld [vmem:[#allocation7 + $0x1c] sm:$0xf]
        %v372 = vld [vmem:[#allocation7 + $0x20] sm:$0xf]
        %v373 = vld [vmem:[#allocation2 + $0x8] sm:$0x1]
        %s374 = scalar_lea.vmem [#allocation7], 36
        %v375 = vld [vmem:[%s374] sm:$0xf]
        %v376 = vld [vmem:[%s374 + $0x4] sm:$0xf]
        %v377 = vld [vmem:[%s374 + $0x8] sm:$0xf]
        %v378 = vld [vmem:[%s374 + $0xc] sm:$0xf]
        %v379 = vld [vmem:[%s374 + $0x10] sm:$0xf]
        %v380 = vld [vmem:[%s374 + $0x14] sm:$0xf]
        %v381 = vld [vmem:[%s374 + $0x18] sm:$0xf]
        %v382 = vld [vmem:[%s374 + $0x1c] sm:$0xf]
        %v383 = vld [vmem:[%s374 + $0x20] sm:$0xf]
        %v387 = vunpack.c.l.b16 %v362
        %v388 = vunpack.c.l.b16 %v363
        %v389 = vunpack.c.l.b16 %v373
        %v390 = vpack.c.b16 %v388, %v387
        %v391 = vpack.c.b16 %v389, %v389
        %vm392 = vsmask.f32 7424
        %v394 = vshrl.u32 %v390, 16
        %v396 = vshll.u32 %v390, 16
        %v398 = vrot.slane %v396, 1
        %v399 = vor.u32 %v394, %v398
        %v401 = vshll.u32 %v391, 16
        %v403 = vrot.slane %v401, 1
        %v404 = vsel %vm392, %v399, %v403
        %v414 = vunpack.c.l.b16 %v375
        %v415 = vunpack.c.l.b16 %v376
        %v416 = vunpack.c.l.b16 %v377
        %v417 = vunpack.c.l.b16 %v378
        %v418 = vunpack.c.l.b16 %v379
        %v419 = vunpack.c.l.b16 %v380
        %v420 = vunpack.c.l.b16 %v381
        %v421 = vunpack.c.l.b16 %v382
        %v422 = vunpack.c.l.b16 %v383
        %v423 = vpack.c.b16 %v415, %v414
        %v424 = vpack.c.b16 %v417, %v416
        %v425 = vpack.c.b16 %v419, %v418
        %v426 = vpack.c.b16 %v421, %v420
        %v427 = vpack.c.b16 %v422, %v422
        %vm432 = vcmask 588800
        %v434 = vsel %vm432, %v404, 0
        %vm436 = vcmask 1043456
        %v438 = vsel %vm436, %v427, 0
        %440 = vmatprep.subr.bf16.mxu0 0
        %441 = vmatpush1.bf16.msra.mxu0 %v423
        %442 = vmatprep.subr.bf16.mxu0 0
        %443 = vmatpush1.bf16.msra.mxu0 %v424
        %444 = vmatprep.subr.bf16.mxu0 0
        %445 = vmatpush1.bf16.msra.mxu0 %v425
        %446 = vmatprep.subr.bf16.mxu0 0
        %447 = vmatpush1.bf16.msra.mxu0 %v426
        %448 = vmatprep.subr.bf16.mxu0 0
        %449 = vmatpush1.bf16.msra.mxu0 %v438
        %450 = vmatprep.subr.bf16.mxu0 0
        %451 = vmatpush1.bf16.msra.mxu0 0
        %452 = vmatprep.subr.bf16.mxu0 0
        %453 = vmatpush1.bf16.msra.mxu0 0
        %454 = vmatprep.subr.bf16.mxu0 0
        %455 = vmatpush1.bf16.msra.mxu0 0
        %456 = vmatprep.subr.bf16.mxu0 0
        %457 = vmatpush1.bf16.msra.mxu0 0
        %458 = vmatprep.subr.bf16.mxu0 0
        %459 = vmatpush1.bf16.msra.mxu0 0
        %460 = vmatprep.subr.bf16.mxu0 0
        %461 = vmatpush1.bf16.msra.mxu0 0
        %462 = vmatprep.subr.bf16.mxu0 0
        %463 = vmatpush1.bf16.msra.mxu0 0
        %464 = vmatprep.subr.bf16.mxu0 0
        %465 = vmatpush1.bf16.msra.mxu0 0
        %466 = vmatprep.subr.bf16.mxu0 0
        %467 = vmatpush1.bf16.msra.mxu0 0
        %468 = vmatprep.subr.bf16.mxu0 0
        %469 = vmatpush1.bf16.msra.mxu0 0
        %470 = vmatprep.subr.bf16.mxu0 0
        %471 = vmatpush1.bf16.msra.mxu0 0
        %472 = vmatprep.mubr.bf16.mxu0 0
        %473 = vmatmul.mubr.bf16.gmra.mrb[0].mxu0 %v434
        %v474 = vpop.f32.mrb[0].mxu0
        %v475 = vadd.f32 0.0, %v474
        %v476 = vpop.f32.mrb[0].mxu0
        %v477 = vpop.f32.mrb[0].mxu0
        %v478 = vadd.f32 0.0, %v477
        %v479 = vpop.f32.mrb[0].mxu0
        %480 = vdwg.mxu0
        %v490 = vunpack.c.l.b16 %v364
        %v491 = vunpack.c.l.b16 %v365
        %v492 = vunpack.c.l.b16 %v366
        %v493 = vunpack.c.l.b16 %v367
        %v494 = vunpack.c.l.b16 %v368
        %v495 = vunpack.c.l.b16 %v369
        %v496 = vunpack.c.l.b16 %v370
        %v497 = vunpack.c.l.b16 %v371
        %v498 = vunpack.c.l.b16 %v372
        %v499 = vpack.c.b16 %v491, %v490
        %v500 = vpack.c.b16 %v493, %v492
        %v501 = vpack.c.b16 %v495, %v494
        %v502 = vpack.c.b16 %v497, %v496
        %v503 = vpack.c.b16 %v498, %v498
        %v508 = vsel %vm432, %v390, 0
        %v511 = vsel %vm436, %v503, 0
        %513 = vmatprep.subr.bf16.mxu0 0
        %514 = vmatpush1.bf16.msra.mxu0 %v499
        %515 = vmatprep.subr.bf16.mxu0 0
        %516 = vmatpush1.bf16.msra.mxu0 %v500
        %517 = vmatprep.subr.bf16.mxu0 0
        %518 = vmatpush1.bf16.msra.mxu0 %v501
        %519 = vmatprep.subr.bf16.mxu0 0
        %520 = vmatpush1.bf16.msra.mxu0 %v502
        %521 = vmatprep.subr.bf16.mxu0 0
        %522 = vmatpush1.bf16.msra.mxu0 %v511
        %523 = vmatprep.subr.bf16.mxu0 0
        %524 = vmatpush1.bf16.msra.mxu0 0
        %525 = vmatprep.subr.bf16.mxu0 0
        %526 = vmatpush1.bf16.msra.mxu0 0
        %527 = vmatprep.subr.bf16.mxu0 0
        %528 = vmatpush1.bf16.msra.mxu0 0
        %529 = vmatprep.subr.bf16.mxu0 0
        %530 = vmatpush1.bf16.msra.mxu0 0
        %531 = vmatprep.subr.bf16.mxu0 0
        %532 = vmatpush1.bf16.msra.mxu0 0
        %533 = vmatprep.subr.bf16.mxu0 0
        %534 = vmatpush1.bf16.msra.mxu0 0
        %535 = vmatprep.subr.bf16.mxu0 0
        %536 = vmatpush1.bf16.msra.mxu0 0
        %537 = vmatprep.subr.bf16.mxu0 0
        %538 = vmatpush1.bf16.msra.mxu0 0
        %539 = vmatprep.subr.bf16.mxu0 0
        %540 = vmatpush1.bf16.msra.mxu0 0
        %541 = vmatprep.subr.bf16.mxu0 0
        %542 = vmatpush1.bf16.msra.mxu0 0
        %543 = vmatprep.subr.bf16.mxu0 0
        %544 = vmatpush1.bf16.msra.mxu0 0
        %545 = vmatprep.mubr.bf16.mxu0 0
        %546 = vmatmul.mubr.bf16.gmra.mrb[0].mxu0 %v508
        %v547 = vpop.f32.mrb[0].mxu0
        %v548 = vadd.f32 %v475, %v547
        %v549 = vpop.f32.mrb[0].mxu0
        %v550 = vpop.f32.mrb[0].mxu0
        %v551 = vadd.f32 %v478, %v550
        %v552 = vpop.f32.mrb[0].mxu0
        %553 = vdwg.mxu0
        %v554 = vld [vmem:[#allocation2] sm:$0xe]
        %s555 = scalar_lea.vmem [#allocation7], 72
        %v556 = vld [vmem:[%s555] sm:$0xf]
        %v557 = vld [vmem:[%s555 + $0x4] sm:$0xf]
        %v558 = vld [vmem:[%s555 + $0x8] sm:$0xf]
        %v559 = vld [vmem:[%s555 + $0xc] sm:$0xf]
        %v560 = vld [vmem:[%s555 + $0x10] sm:$0xf]
        %v561 = vld [vmem:[%s555 + $0x14] sm:$0xf]
        %v562 = vld [vmem:[%s555 + $0x18] sm:$0xf]
        %v563 = vld [vmem:[%s555 + $0x1c] sm:$0xf]
        %v564 = vld [vmem:[%s555 + $0x20] sm:$0xf]
        %v566 = vunpack.c.l.b16 %v554
        %v567 = vpack.c.b16 %v388, %v566
        %vm568 = vcmask 1046528
        %v569 = vrot.slane %v567, 1
        %v570 = vrot.slane %v391, 1
        %v571 = vsel %vm568, %v569, %v570
        %v581 = vunpack.c.l.b16 %v556
        %v582 = vunpack.c.l.b16 %v557
        %v583 = vunpack.c.l.b16 %v558
        %v584 = vunpack.c.l.b16 %v559
        %v585 = vunpack.c.l.b16 %v560
        %v586 = vunpack.c.l.b16 %v561
        %v587 = vunpack.c.l.b16 %v562
        %v588 = vunpack.c.l.b16 %v563
        %v589 = vunpack.c.l.b16 %v564
        %v590 = vpack.c.b16 %v582, %v581
        %v591 = vpack.c.b16 %v584, %v583
        %v592 = vpack.c.b16 %v586, %v585
        %v593 = vpack.c.b16 %v588, %v587
        %v594 = vpack.c.b16 %v589, %v589
        %v600 = vsel %vm432, %v571, 0
        %v603 = vsel %vm436, %v594, 0
        %605 = vmatprep.subr.bf16.mxu0 0
        %606 = vmatpush1.bf16.msra.mxu0 %v590
        %607 = vmatprep.subr.bf16.mxu0 0
        %608 = vmatpush1.bf16.msra.mxu0 %v591
        %609 = vmatprep.subr.bf16.mxu0 0
        %610 = vmatpush1.bf16.msra.mxu0 %v592
        %611 = vmatprep.subr.bf16.mxu0 0
        %612 = vmatpush1.bf16.msra.mxu0 %v593
        %613 = vmatprep.subr.bf16.mxu0 0
        %614 = vmatpush1.bf16.msra.mxu0 %v603
        %615 = vmatprep.subr.bf16.mxu0 0
        %616 = vmatpush1.bf16.msra.mxu0 0
        %617 = vmatprep.subr.bf16.mxu0 0
        %618 = vmatpush1.bf16.msra.mxu0 0
        %619 = vmatprep.subr.bf16.mxu0 0
        %620 = vmatpush1.bf16.msra.mxu0 0
        %621 = vmatprep.subr.bf16.mxu0 0
        %622 = vmatpush1.bf16.msra.mxu0 0
        %623 = vmatprep.subr.bf16.mxu0 0
        %624 = vmatpush1.bf16.msra.mxu0 0
        %625 = vmatprep.subr.bf16.mxu0 0
        %626 = vmatpush1.bf16.msra.mxu0 0
        %627 = vmatprep.subr.bf16.mxu0 0
        %628 = vmatpush1.bf16.msra.mxu0 0
        %629 = vmatprep.subr.bf16.mxu0 0
        %630 = vmatpush1.bf16.msra.mxu0 0
        %631 = vmatprep.subr.bf16.mxu0 0
        %632 = vmatpush1.bf16.msra.mxu0 0
        %633 = vmatprep.subr.bf16.mxu0 0
        %634 = vmatpush1.bf16.msra.mxu0 0
        %635 = vmatprep.subr.bf16.mxu0 0
        %636 = vmatpush1.bf16.msra.mxu0 0
        %637 = vmatprep.mubr.bf16.mxu0 0
        %638 = vmatmul.mubr.bf16.gmra.mrb[0].mxu0 %v600
        %v639 = vpop.f32.mrb[0].mxu0
        %v640 = vadd.f32 0.0, %v639
        %v641 = vpop.f32.mrb[0].mxu0
        %v642 = vpop.f32.mrb[0].mxu0
        %v643 = vadd.f32 0.0, %v642
        %v644 = vpop.f32.mrb[0].mxu0
        %645 = vdwg.mxu0
        %v646 = vadd.f32 %v548, %v640
        %v647 = vadd.f32 %v551, %v643
        %v648 = vld [vmem:[%s2] sm:$0x1]
        %v650 = vlaneseq
        %v651 = vshrl.u32 %v650, 7
        %v652 = vsub.s32 0, %v651
        %v653 = vrot.slane %v648, %v652
        %v655 = vadd.f32 %v646, %v653
        %v656 = vadd.f32 %v647, %v653
        %v657 = vmax.f32 %v655, 0.0
        %v658 = vmax.f32 %v656, 0.0
        %v659 = vpack.c.bf16 %v658, %v657
        %v661 = vunpack.c.l.b16 %v659
        %v662 = vunpack.c.h.b16 %v659
        %v663 = vpack.c.b16 %v661, %v661
        %v664 = vpack.c.b16 %v662, %v662
        %v666 = vshrl.u32 %v663, 16
        %v668 = vrot.slane %v666, 7
        %v669 = vshll.u32 %v663, 16
        %v671 = vor.u32 %v668, %v669
        %v672 = vrot.slane %v668, 4
        %v674 = vshrl.u32 %v664, 16
        %v676 = vrot.slane %v674, 7
        %v677 = vshll.u32 %v664, 16
        %v679 = vor.u32 %v676, %v677
        %v680 = vsel %vm323, %v672, %v679
        %v681 = vrot.slane %v676, 4
        %682 = vrot.lane.b32.xlu0 %v671, 8
        %v683 = vpop.permute.xlu0 %682
        %684 = vrot.lane.b32.xlu0 %v680, 8
        %v685 = vpop.permute.xlu0 %684
        %686 = vrot.lane.b32.xlu0 %v681, 8
        %v687 = vpop.permute.xlu0 %686
        %v688 = vrot.slane %v683, 4
        %v689 = vrot.slane %v685, 4
        %v690 = vrot.slane %v687, 4
        %vm691 = vcmask 64512
        %v692 = vsel %vm691, %v688, %v683
        %v693 = vsel %vm691, %v689, %v685
        %v694 = vsel %vm691, %v690, %v687
        %vm698 = vcmask 1043520
        %vm699 = vmand %vm698, %vm279
        %vm700 = vcmask 64516
        %vm701 = vmand %vm700, %vm304
        %vm702 = vmor %vm701, %vm699
        %v703 = vld [vmem:[#allocation3] sm:$0xff]
        %v704 = vsel %vm702, %v692, %v703
        %705 = vst [vmem:[#allocation3] sm:$0xff] %v704
        %vm706 = vcmask 1043520
        %vm707 = vcmask 64516
        %vm708 = vmor %vm707, %vm706
        %709 = vst.msk [vmem:[#allocation3 + $0x8] sm:$0xff] %vm708, %v693
        %vm710 = vcmask 1040448
        %vm711 = vmand %vm710, %vm274
        %vm712 = vcmask 61444
        %vm713 = vmand %vm712, %vm297
        %vm714 = vmor %vm713, %vm711
        %v715 = vld [vmem:[#allocation3 + $0x10] sm:$0x11]
        %v716 = vsel %vm714, %v694, %v715
        %717 = vst [vmem:[#allocation3 + $0x10] sm:$0x11] %v716
        %v718 = vld [vmem:[#allocation3] sm:$0xff]
        %v719 = vld [vmem:[#allocation3 + $0x8] sm:$0xff]
        %v720 = vld [vmem:[#allocation9] sm:$0xf]
        %v721 = vld [vmem:[#allocation9 + $0x4] sm:$0xf]
        %v722 = vld [vmem:[#allocation9 + $0x8] sm:$0xf]
        %v723 = vld [vmem:[#allocation9 + $0xc] sm:$0xf]
        %v724 = vld [vmem:[#allocation9 + $0x10] sm:$0xf]
        %v725 = vld [vmem:[#allocation9 + $0x14] sm:$0xf]
        %v726 = vld [vmem:[#allocation9 + $0x18] sm:$0xf]
        %v727 = vld [vmem:[#allocation9 + $0x1c] sm:$0xf]
        %v728 = vld [vmem:[#allocation9 + $0x20] sm:$0xf]
        %v729 = vld [vmem:[#allocation9 + $0x24] sm:$0xf]
        %v730 = vld [vmem:[#allocation9 + $0x28] sm:$0xf]
        %v731 = vld [vmem:[#allocation9 + $0x2c] sm:$0xf]
        %v732 = vld [vmem:[#allocation9 + $0x30] sm:$0xf]
        %v733 = vld [vmem:[#allocation9 + $0x34] sm:$0xf]
        %v734 = vld [vmem:[#allocation9 + $0x38] sm:$0xf]
        %v735 = vld [vmem:[#allocation9 + $0x3c] sm:$0xf]
        %v736 = vld [vmem:[#allocation9 + $0x40] sm:$0xf]
        %v737 = vld [vmem:[#allocation9 + $0x44] sm:$0xf]
        %v738 = vld [vmem:[#allocation3 + $0x10] sm:$0x11]
        %s739 = scalar_lea.vmem [#allocation9], 72
        %v740 = vld [vmem:[%s739] sm:$0xf]
        %v741 = vld [vmem:[%s739 + $0x4] sm:$0xf]
        %v742 = vld [vmem:[%s739 + $0x8] sm:$0xf]
        %v743 = vld [vmem:[%s739 + $0xc] sm:$0xf]
        %v744 = vld [vmem:[%s739 + $0x10] sm:$0xf]
        %v745 = vld [vmem:[%s739 + $0x14] sm:$0xf]
        %v746 = vld [vmem:[%s739 + $0x18] sm:$0xf]
        %v747 = vld [vmem:[%s739 + $0x1c] sm:$0xf]
        %v748 = vld [vmem:[%s739 + $0x20] sm:$0xf]
        %v749 = vld [vmem:[%s739 + $0x24] sm:$0xf]
        %v750 = vld [vmem:[%s739 + $0x28] sm:$0xf]
        %v751 = vld [vmem:[%s739 + $0x2c] sm:$0xf]
        %v752 = vld [vmem:[%s739 + $0x30] sm:$0xf]
        %v753 = vld [vmem:[%s739 + $0x34] sm:$0xf]
        %v754 = vld [vmem:[%s739 + $0x38] sm:$0xf]
        %v755 = vld [vmem:[%s739 + $0x3c] sm:$0xf]
        %v756 = vld [vmem:[%s739 + $0x40] sm:$0xf]
        %v757 = vld [vmem:[%s739 + $0x44] sm:$0xf]
        %v761 = vunpack.c.l.b16 %v718
        %v762 = vunpack.c.h.b16 %v718
        %v763 = vunpack.c.l.b16 %v719
        %v764 = vunpack.c.h.b16 %v719
        %v765 = vunpack.c.l.b16 %v738
        %v766 = vunpack.c.h.b16 %v738
        %v767 = vpack.c.b16 %v763, %v761
        %v768 = vpack.c.b16 %v764, %v762
        %v769 = vpack.c.b16 %v765, %v765
        %v770 = vpack.c.b16 %v766, %v766
        %v772 = vshrl.u32 %v767, 16
        %v774 = vshll.u32 %v767, 16
        %v776 = vrot.slane %v774, 1
        %v777 = vor.u32 %v772, %v776
        %v779 = vshll.u32 %v769, 16
        %v781 = vrot.slane %v779, 1
        %v782 = vsel %vm392, %v777, %v781
        %v784 = vshrl.u32 %v768, 16
        %v786 = vshll.u32 %v768, 16
        %v788 = vrot.slane %v786, 1
        %v789 = vor.u32 %v784, %v788
        %v791 = vshll.u32 %v770, 16
        %v793 = vrot.slane %v791, 1
        %v794 = vsel %vm392, %v789, %v793
        %v814 = vunpack.c.l.b16 %v740
        %v815 = vunpack.c.l.b16 %v741
        %v816 = vunpack.c.l.b16 %v742
        %v817 = vunpack.c.l.b16 %v743
        %v818 = vunpack.c.l.b16 %v744
        %v819 = vunpack.c.l.b16 %v745
        %v820 = vunpack.c.l.b16 %v746
        %v821 = vunpack.c.l.b16 %v747
        %v822 = vunpack.c.l.b16 %v748
        %v823 = vunpack.c.l.b16 %v749
        %v824 = vunpack.c.l.b16 %v750
        %v825 = vunpack.c.l.b16 %v751
        %v826 = vunpack.c.l.b16 %v752
        %v827 = vunpack.c.l.b16 %v753
        %v828 = vunpack.c.l.b16 %v754
        %v829 = vunpack.c.l.b16 %v755
        %v830 = vunpack.c.l.b16 %v756
        %v831 = vunpack.c.l.b16 %v757
        %v832 = vpack.c.b16 %v815, %v814
        %v833 = vpack.c.b16 %v817, %v816
        %v834 = vpack.c.b16 %v819, %v818
        %v835 = vpack.c.b16 %v821, %v820
        %v836 = vpack.c.b16 %v823, %v822
        %v837 = vpack.c.b16 %v825, %v824
        %v838 = vpack.c.b16 %v827, %v826
        %v839 = vpack.c.b16 %v829, %v828
        %v840 = vpack.c.b16 %v831, %v830
        %vm850 = vcmask 130048
        %v852 = vsel %vm850, %v794, 0
        %854 = vmatprep.subr.bf16.mxu0 0
        %855 = vmatpush1.bf16.msra.mxu0 %v832
        %856 = vmatprep.subr.bf16.mxu0 0
        %857 = vmatpush1.bf16.msra.mxu0 %v833
        %858 = vmatprep.subr.bf16.mxu0 0
        %859 = vmatpush1.bf16.msra.mxu0 %v834
        %860 = vmatprep.subr.bf16.mxu0 0
        %861 = vmatpush1.bf16.msra.mxu0 %v835
        %862 = vmatprep.subr.bf16.mxu0 0
        %863 = vmatpush1.bf16.msra.mxu0 %v836
        %864 = vmatprep.subr.bf16.mxu0 0
        %865 = vmatpush1.bf16.msra.mxu0 %v837
        %866 = vmatprep.subr.bf16.mxu0 0
        %867 = vmatpush1.bf16.msra.mxu0 %v838
        %868 = vmatprep.subr.bf16.mxu0 0
        %869 = vmatpush1.bf16.msra.mxu0 %v839
        %870 = vmatprep.subr.bf16.mxu0 0
        %871 = vmatpush1.bf16.msra.mxu0 %v840
        %872 = vmatprep.subr.bf16.mxu0 0
        %873 = vmatpush1.bf16.msra.mxu0 0
        %874 = vmatprep.subr.bf16.mxu0 0
        %875 = vmatpush1.bf16.msra.mxu0 0
        %876 = vmatprep.subr.bf16.mxu0 0
        %877 = vmatpush1.bf16.msra.mxu0 0
        %878 = vmatprep.subr.bf16.mxu0 0
        %879 = vmatpush1.bf16.msra.mxu0 0
        %880 = vmatprep.subr.bf16.mxu0 0
        %881 = vmatpush1.bf16.msra.mxu0 0
        %882 = vmatprep.subr.bf16.mxu0 0
        %883 = vmatpush1.bf16.msra.mxu0 0
        %884 = vmatprep.subr.bf16.mxu0 0
        %885 = vmatpush1.bf16.msra.mxu0 0
        %886 = vmatprep.mubr.bf16.mxu0 %v852
        %887 = vmatmul.mubr.bf16.gmra.mrb[0].mxu0 %v782
        %v888 = vpop.f32.mrb[0].mxu0
        %v889 = vadd.f32 0.0, %v888
        %v890 = vpop.f32.mrb[0].mxu0
        %v891 = vpop.f32.mrb[0].mxu0
        %v892 = vadd.f32 0.0, %v891
        %v893 = vpop.f32.mrb[0].mxu0
        %894 = vdwg.mxu0
        %v914 = vunpack.c.l.b16 %v720
        %v915 = vunpack.c.l.b16 %v721
        %v916 = vunpack.c.l.b16 %v722
        %v917 = vunpack.c.l.b16 %v723
        %v918 = vunpack.c.l.b16 %v724
        %v919 = vunpack.c.l.b16 %v725
        %v920 = vunpack.c.l.b16 %v726
        %v921 = vunpack.c.l.b16 %v727
        %v922 = vunpack.c.l.b16 %v728
        %v923 = vunpack.c.l.b16 %v729
        %v924 = vunpack.c.l.b16 %v730
        %v925 = vunpack.c.l.b16 %v731
        %v926 = vunpack.c.l.b16 %v732
        %v927 = vunpack.c.l.b16 %v733
        %v928 = vunpack.c.l.b16 %v734
        %v929 = vunpack.c.l.b16 %v735
        %v930 = vunpack.c.l.b16 %v736
        %v931 = vunpack.c.l.b16 %v737
        %v932 = vpack.c.b16 %v915, %v914
        %v933 = vpack.c.b16 %v917, %v916
        %v934 = vpack.c.b16 %v919, %v918
        %v935 = vpack.c.b16 %v921, %v920
        %v936 = vpack.c.b16 %v923, %v922
        %v937 = vpack.c.b16 %v925, %v924
        %v938 = vpack.c.b16 %v927, %v926
        %v939 = vpack.c.b16 %v929, %v928
        %v940 = vpack.c.b16 %v931, %v930
        %v950 = vsel %vm850, %v768, 0
        %952 = vmatprep.subr.bf16.mxu0 0
        %953 = vmatpush1.bf16.msra.mxu0 %v932
        %954 = vmatprep.subr.bf16.mxu0 0
        %955 = vmatpush1.bf16.msra.mxu0 %v933
        %956 = vmatprep.subr.bf16.mxu0 0
        %957 = vmatpush1.bf16.msra.mxu0 %v934
        %958 = vmatprep.subr.bf16.mxu0 0
        %959 = vmatpush1.bf16.msra.mxu0 %v935
        %960 = vmatprep.subr.bf16.mxu0 0
        %961 = vmatpush1.bf16.msra.mxu0 %v936
        %962 = vmatprep.subr.bf16.mxu0 0
        %963 = vmatpush1.bf16.msra.mxu0 %v937
        %964 = vmatprep.subr.bf16.mxu0 0
        %965 = vmatpush1.bf16.msra.mxu0 %v938
        %966 = vmatprep.subr.bf16.mxu0 0
        %967 = vmatpush1.bf16.msra.mxu0 %v939
        %968 = vmatprep.subr.bf16.mxu0 0
        %969 = vmatpush1.bf16.msra.mxu0 %v940
        %970 = vmatprep.subr.bf16.mxu0 0
        %971 = vmatpush1.bf16.msra.mxu0 0
        %972 = vmatprep.subr.bf16.mxu0 0
        %973 = vmatpush1.bf16.msra.mxu0 0
        %974 = vmatprep.subr.bf16.mxu0 0
        %975 = vmatpush1.bf16.msra.mxu0 0
        %976 = vmatprep.subr.bf16.mxu0 0
        %977 = vmatpush1.bf16.msra.mxu0 0
        %978 = vmatprep.subr.bf16.mxu0 0
        %979 = vmatpush1.bf16.msra.mxu0 0
        %980 = vmatprep.subr.bf16.mxu0 0
        %981 = vmatpush1.bf16.msra.mxu0 0
        %982 = vmatprep.subr.bf16.mxu0 0
        %983 = vmatpush1.bf16.msra.mxu0 0
        %984 = vmatprep.mubr.bf16.mxu0 %v950
        %985 = vmatmul.mubr.bf16.gmra.mrb[0].mxu0 %v767
        %v986 = vpop.f32.mrb[0].mxu0
        %v987 = vadd.f32 %v889, %v986
        %v988 = vpop.f32.mrb[0].mxu0
        %v989 = vpop.f32.mrb[0].mxu0
        %v990 = vadd.f32 %v892, %v989
        %v991 = vpop.f32.mrb[0].mxu0
        %992 = vdwg.mxu0
        %v993 = vld [vmem:[#allocation3] sm:$0xee]
        %s994 = scalar_lea.vmem [#allocation9], 144
        %v995 = vld [vmem:[%s994] sm:$0xf]
        %v996 = vld [vmem:[%s994 + $0x4] sm:$0xf]
        %v997 = vld [vmem:[%s994 + $0x8] sm:$0xf]
        %v998 = vld [vmem:[%s994 + $0xc] sm:$0xf]
        %v999 = vld [vmem:[%s994 + $0x10] sm:$0xf]
        %v1000 = vld [vmem:[%s994 + $0x14] sm:$0xf]
        %v1001 = vld [vmem:[%s994 + $0x18] sm:$0xf]
        %v1002 = vld [vmem:[%s994 + $0x1c] sm:$0xf]
        %v1003 = vld [vmem:[%s994 + $0x20] sm:$0xf]
        %v1004 = vld [vmem:[%s994 + $0x24] sm:$0xf]
        %v1005 = vld [vmem:[%s994 + $0x28] sm:$0xf]
        %v1006 = vld [vmem:[%s994 + $0x2c] sm:$0xf]
        %v1007 = vld [vmem:[%s994 + $0x30] sm:$0xf]
        %v1008 = vld [vmem:[%s994 + $0x34] sm:$0xf]
        %v1009 = vld [vmem:[%s994 + $0x38] sm:$0xf]
        %v1010 = vld [vmem:[%s994 + $0x3c] sm:$0xf]
        %v1011 = vld [vmem:[%s994 + $0x40] sm:$0xf]
        %v1012 = vld [vmem:[%s994 + $0x44] sm:$0xf]
        %v1014 = vunpack.c.l.b16 %v993
        %v1015 = vunpack.c.h.b16 %v993
        %v1016 = vpack.c.b16 %v763, %v1014
        %v1017 = vpack.c.b16 %v764, %v1015
        %v1018 = vrot.slane %v1016, 1
        %v1019 = vrot.slane %v769, 1
        %v1020 = vsel %vm568, %v1018, %v1019
        %v1021 = vrot.slane %v1017, 1
        %v1022 = vrot.slane %v770, 1
        %v1023 = vsel %vm568, %v1021, %v1022
        %v1043 = vunpack.c.l.b16 %v995
        %v1044 = vunpack.c.l.b16 %v996
        %v1045 = vunpack.c.l.b16 %v997
        %v1046 = vunpack.c.l.b16 %v998
        %v1047 = vunpack.c.l.b16 %v999
        %v1048 = vunpack.c.l.b16 %v1000
        %v1049 = vunpack.c.l.b16 %v1001
        %v1050 = vunpack.c.l.b16 %v1002
        %v1051 = vunpack.c.l.b16 %v1003
        %v1052 = vunpack.c.l.b16 %v1004
        %v1053 = vunpack.c.l.b16 %v1005
        %v1054 = vunpack.c.l.b16 %v1006
        %v1055 = vunpack.c.l.b16 %v1007
        %v1056 = vunpack.c.l.b16 %v1008
        %v1057 = vunpack.c.l.b16 %v1009
        %v1058 = vunpack.c.l.b16 %v1010
        %v1059 = vunpack.c.l.b16 %v1011
        %v1060 = vunpack.c.l.b16 %v1012
        %v1061 = vpack.c.b16 %v1044, %v1043
        %v1062 = vpack.c.b16 %v1046, %v1045
        %v1063 = vpack.c.b16 %v1048, %v1047
        %v1064 = vpack.c.b16 %v1050, %v1049
        %v1065 = vpack.c.b16 %v1052, %v1051
        %v1066 = vpack.c.b16 %v1054, %v1053
        %v1067 = vpack.c.b16 %v1056, %v1055
        %v1068 = vpack.c.b16 %v1058, %v1057
        %v1069 = vpack.c.b16 %v1060, %v1059
        %v1080 = vsel %vm850, %v1023, 0
        %1082 = vmatprep.subr.bf16.mxu0 0
        %1083 = vmatpush1.bf16.msra.mxu0 %v1061
        %1084 = vmatprep.subr.bf16.mxu0 0
        %1085 = vmatpush1.bf16.msra.mxu0 %v1062
        %1086 = vmatprep.subr.bf16.mxu0 0
        %1087 = vmatpush1.bf16.msra.mxu0 %v1063
        %1088 = vmatprep.subr.bf16.mxu0 0
        %1089 = vmatpush1.bf16.msra.mxu0 %v1064
        %1090 = vmatprep.subr.bf16.mxu0 0
        %1091 = vmatpush1.bf16.msra.mxu0 %v1065
        %1092 = vmatprep.subr.bf16.mxu0 0
        %1093 = vmatpush1.bf16.msra.mxu0 %v1066
        %1094 = vmatprep.subr.bf16.mxu0 0
        %1095 = vmatpush1.bf16.msra.mxu0 %v1067
        %1096 = vmatprep.subr.bf16.mxu0 0
        %1097 = vmatpush1.bf16.msra.mxu0 %v1068
        %1098 = vmatprep.subr.bf16.mxu0 0
        %1099 = vmatpush1.bf16.msra.mxu0 %v1069
        %1100 = vmatprep.subr.bf16.mxu0 0
        %1101 = vmatpush1.bf16.msra.mxu0 0
        %1102 = vmatprep.subr.bf16.mxu0 0
        %1103 = vmatpush1.bf16.msra.mxu0 0
        %1104 = vmatprep.subr.bf16.mxu0 0
        %1105 = vmatpush1.bf16.msra.mxu0 0
        %1106 = vmatprep.subr.bf16.mxu0 0
        %1107 = vmatpush1.bf16.msra.mxu0 0
        %1108 = vmatprep.subr.bf16.mxu0 0
        %1109 = vmatpush1.bf16.msra.mxu0 0
        %1110 = vmatprep.subr.bf16.mxu0 0
        %1111 = vmatpush1.bf16.msra.mxu0 0
        %1112 = vmatprep.subr.bf16.mxu0 0
        %1113 = vmatpush1.bf16.msra.mxu0 0
        %1114 = vmatprep.mubr.bf16.mxu0 %v1080
        %1115 = vmatmul.mubr.bf16.gmra.mrb[0].mxu0 %v1020
        %v1116 = vpop.f32.mrb[0].mxu0
        %v1117 = vadd.f32 0.0, %v1116
        %v1118 = vpop.f32.mrb[0].mxu0
        %v1119 = vpop.f32.mrb[0].mxu0
        %v1120 = vadd.f32 0.0, %v1119
        %v1121 = vpop.f32.mrb[0].mxu0
        %1122 = vdwg.mxu0
        %v1123 = vadd.f32 %v987, %v1117
        %v1124 = vadd.f32 %v990, %v1120
        %v1125 = vld [vmem:[%s4] sm:$0x1]
        %v1127 = vlaneseq
        %v1128 = vshrl.u32 %v1127, 7
        %v1129 = vsub.s32 0, %v1128
        %v1130 = vrot.slane %v1125, %v1129
        %v1132 = vadd.f32 %v1123, %v1130
        %v1133 = vadd.f32 %v1124, %v1130
        %v1134 = vmax.f32 %v1132, 0.0
        %v1135 = vmax.f32 %v1133, 0.0
        %v1136 = vpack.c.bf16 %v1135, %v1134
        %v1138 = vunpack.c.l.b16 %v1136
        %v1139 = vunpack.c.h.b16 %v1136
        %v1140 = vpack.c.b16 %v1138, %v1138
        %v1141 = vpack.c.b16 %v1139, %v1139
        %1144 = vst [vmem:[%s271] sm:$0xf] %v1140
        %1145 = vst [vmem:[%s271 + $0x4] sm:$0xf] %v1141
        %s1146 = sand.u32 %s141, 1
        %s1147 = scalar_lea.sflag [#allocation6], %s1146
        %s1148 = sand.u32 %s141, 1
        %s1149 = smul.addr %s1148, 8
        %s1150 = scalar_lea.vmem [#allocation10], %s1149
        // Predicated region
        $region53: #{tpu_custom_call.1} parent=39 // pred_check
          %p1151 = pneg %p151
        $region54: #{tpu_custom_call.1} parent=39 // pred_check_branch
          %1153 = sbr.rel (%p1151) target = $region56
        $region55: #{tpu_custom_call.1} parent=39 // pred_region
          %s1155 = ssub.s32 128, 128
          %1156 = vsyncadd %s1147, %s1155
          %s1157 = smul.addr %s23, 2
          %s1158 = smul.addr %s1157, 64
          %s1159 = scalar_lea.hbm %s5, %s1158
          %s1160 = sshll.u32 %s1150, 4
          %s1161 = int_to_ptr.vmem [resolvable:$true] %s1160
          %1166 = dma.vmem_to_hbm [thread:$0]  %s1161, 128, %s1159, %s1147, 64, 64, 4
        $region56: #{tpu_custom_call.1} parent=39 // pred_fallthru
          _
      $region40: #{tpu_custom_call.1} parent=5 // pred_fallthru
        _
      %p1167 = scmp.le.s32.totalorder 2, %s18
      // Predicated region
      $region57: #{tpu_custom_call.1} parent=5 // pred_check
        %p1168 = pneg %p1167
      $region58: #{tpu_custom_call.1} parent=5 // pred_check_branch
        %1170 = sbr.rel (%p1168) target = $region60
      $region59: #{tpu_custom_call.1} parent=5 // pred_region
        %s1171 = ssub.s32 %s18, 2
        // Predicated region
        $region61: #{tpu_custom_call.1} parent=59 // pred_check
          %p1172 = pneg %p157
        $region62: #{tpu_custom_call.1} parent=59 // pred_check_branch
          %1174 = sbr.rel (%p1172) target = $region64
        $region63: #{tpu_custom_call.1} parent=59 // pred_region
          %s1175 = sand.u32 %s142, 1
          %s1176 = scalar_lea.sflag [#allocation6], %s1175
          %s1177 = sand.u32 %s142, 1
          %s1178 = smul.addr %s1177, 8
          %s1179 = scalar_lea.vmem [#allocation10], %s1178
          %1180 = dma.done %s1176, 128
        $region64: #{tpu_custom_call.1} parent=59 // pred_fallthru
          _
      $region60: #{tpu_custom_call.1} parent=5 // pred_fallthru
        _
    $region6: #{tpu_custom_call.1} parent=1 // loop_footer
      %s22 = sadd.s32 1, %s18
    $region7: #{tpu_custom_call.1} parent=1 // loop_footer_branch
      %17 = sbr.rel target = $region3
    $region8: #{tpu_custom_call.1} parent=1 // loop_exit
      _
    %1181 = vsyncpa [#allocation5], 1
    %s1182 = scalar_lea.sflag [#allocation5], 1
    %1183 = vsyncpa %s1182, 1
    %1184 = vsyncpa [#allocation8], 1
    %1185 = vsyncpa [#allocation6], 1
    %s1186 = scalar_lea.sflag [#allocation6], 1
    %1187 = vsyncpa %s1186, 1

</llo_original>
